<compile_context>
chip_gen: v7x
topology: tpu7x:2x2x1
jax: 0.10.0
libtpu: 0.0.40
codegen_flags: <defaults>
</compile_context>

<pallas_src>
import functools

import jax
import jax.numpy as jnp
from jax.experimental import pallas as pl
from jax.experimental.pallas import tpu as pltpu


def _round_up(x: int, m: int) -> int:
    return ((x + m - 1) // m) * m


def actor_critic_kernel(x_ref, w1_ref, b1_ref, w2_ref, b2_ref,
                        wh_ref, bh_ref, wc_ref, bc_ref, out_ref, *, actions):
    x = x_ref[...].astype(jnp.float32)
    B = x.shape[0]
    HW = out_ref.shape[1]

    # F.normalize(x, dim=0): per-column L2 norm over the batch, eps = 1e-12.
    # rsqrt(max(sumsq, eps^2)) == 1 / max(norm, eps); rsqrt runs on the EUP slot.
    sumsq = jnp.sum(x * x, axis=0, keepdims=True)
    xn = x * jax.lax.rsqrt(jnp.maximum(sumsq, 1e-24))

    # input_layer + relu  (bf16 MXU operands, f32 accumulation & elementwise)
    h0 = jnp.dot(xn.astype(w1_ref.dtype), w1_ref[...],
                 preferred_element_type=jnp.float32) + b1_ref[...]
    h0 = jnp.maximum(h0, 0.0)

    # hidden_layer_1 + relu
    h1 = jnp.dot(h0.astype(w2_ref.dtype), w2_ref[...],
                 preferred_element_type=jnp.float32) + b2_ref[...]
    h1 = jnp.maximum(h1, 0.0)

    # Fused heads: lanes [0, actions) hold actor logits, lanes
    # [actions, actions+64) hold hidden_layer_2 pre-activations, rest are
    # zero-padded.  One wide MXU matmul instead of two narrow ones.
    heads = jnp.dot(h1.astype(wh_ref.dtype), wh_ref[...],
                    preferred_element_type=jnp.float32) + bh_ref[...]

    # Actor: log_softmax over dim=0 (batch axis), computed lane-wise.  Padding
    # lanes produce finite garbage that is masked out below.
    m = jnp.max(heads, axis=0, keepdims=True)
    lse = jnp.log(jnp.sum(jnp.exp(heads - m), axis=0, keepdims=True)) + m
    log_probs = heads - lse

    # Critic: relu(h2) @ wc as VPU multiply + lane reduce (wc_row is zero
    # outside the hidden_layer_2 lanes, so actor/padding lanes contribute 0).
    h2 = jnp.maximum(heads, 0.0)
    c = jnp.sum(h2 * wc_ref[...], axis=-1, keepdims=True) + bc_ref[...]
    critic = jnp.tanh(c)

    # Single lane-dense [B, HW] output: actor log-probs in lanes [0, actions),
    # critic value in lane `actions`, zeros elsewhere.
    lane = jax.lax.broadcasted_iota(jnp.int32, (B, HW), 1)
    out = jnp.where(lane < actions, log_probs, 0.0)
    out = jnp.where(lane == actions, critic, out)
    out_ref[...] = out


def pack_params(params, actions, *, matmul_dtype=jnp.bfloat16):
    """Fuse the two h1-consuming heads into one padded lane-dense weight and
    cast matmul weights to bf16 (biases / critic row stay f32)."""
    (w1, b1, w2, b2, wa, ba, w3, b3, wc, bc) = params
    h2_width = w3.shape[1]                                   # 64
    hw = max(128, _round_up(actions + h2_width, 128))
    k = wa.shape[0]                                          # 128

    w_heads = jnp.zeros((k, hw), jnp.float32)
    w_heads = w_heads.at[:, :actions].set(wa)
    w_heads = w_heads.at[:, actions:actions + h2_width].set(w3)

    b_heads = jnp.zeros((1, hw), jnp.float32)
    b_heads = b_heads.at[:, :actions].set(ba)
    b_heads = b_heads.at[:, actions:actions + h2_width].set(b3)

    wc_row = jnp.zeros((1, hw), jnp.float32)
    wc_row = wc_row.at[:, actions:actions + h2_width].set(wc.T)

    return (w1.astype(matmul_dtype), b1,
            w2.astype(matmul_dtype), b2,
            w_heads.astype(matmul_dtype), b_heads,
            wc_row, bc)


def actor_critic_forward(x, packed, actions):
    (w1, b1, w2, b2, wh, bh, wc_row, bc) = packed
    B = x.shape[0]
    hw = wh.shape[1]

    vmem = pl.BlockSpec(memory_space=pltpu.MemorySpace.VMEM)
    out = pl.pallas_call(
        functools.partial(actor_critic_kernel, actions=actions),
        out_shape=jax.ShapeDtypeStruct((B, hw), jnp.float32),
        in_specs=[vmem] * 9,
        out_specs=vmem,
    )(x, w1, b1, w2, b2, wh, bh, wc_row, bc)

    actor = out[:, :actions]
    critic = out[:, actions:actions + 1]
    return actor, critic


def init_params(observations, actions, key):
    """Deterministic synthetic init (shapes match the PyTorch module)."""
    keys = jax.random.split(key, 10)

    def lin(kw, kb, fan_in, fan_out):
        bound = 1.0 / jnp.sqrt(fan_in)
        # weight stored as [in, out] (transpose of PyTorch's [out, in])
        w = jax.random.uniform(kw, (fan_in, fan_out), jnp.float32, -bound, bound)
        b = jax.random.uniform(kb, (1, fan_out), jnp.float32, -bound, bound)
        return w, b

    w1, b1 = lin(keys[0], keys[1], observations, 64)   # input_layer
    w2, b2 = lin(keys[2], keys[3], 64, 128)            # hidden_layer_1
    wa, ba = lin(keys[4], keys[5], 128, actions)       # actor_output_layer
    w3, b3 = lin(keys[6], keys[7], 128, 64)            # hidden_layer_2
    wc, bc = lin(keys[8], keys[9], 64, 1)              # critic_output_layer
    return (w1, b1, w2, b2, wa, ba, w3, b3, wc, bc)


def reference_forward(x, params, matmul_dtype=jnp.float32):
    """Pure-JAX reference mirroring the PyTorch forward semantics.
    matmul_dtype=bfloat16 mirrors the kernel's operand rounding for a tight check."""
    (w1, b1, w2, b2, wa, ba, w3, b3, wc, bc) = params

    def mm(a, w):
        return jnp.dot(a.astype(matmul_dtype), w.astype(matmul_dtype),
                       preferred_element_type=jnp.float32)

    sumsq = jnp.sum(x * x, axis=0, keepdims=True)
    xn = x * jax.lax.rsqrt(jnp.maximum(sumsq, 1e-24))   # == F.normalize(x, dim=0)
    h0 = jnp.maximum(mm(xn, w1) + b1, 0.0)
    h1 = jnp.maximum(mm(h0, w2) + b2, 0.0)
    logits = mm(h1, wa) + ba
    actor = logits - jax.scipy.special.logsumexp(logits, axis=0, keepdims=True)
    h2 = jnp.maximum(mm(h1, w3) + b3, 0.0)
    critic = jnp.tanh(h2 @ wc + bc)
    return actor, critic


if __name__ == "__main__":
    B, observations, actions = 8, 16, 4

    key = jax.random.PRNGKey(0)
    k_x, k_p = jax.random.split(key)
    x = jax.random.normal(k_x, (B, observations), dtype=jnp.float32)
    params = init_params(observations, actions, k_p)
    packed = pack_params(params, actions)        # bf16 matmul weights, fused heads

    actor, critic = actor_critic_forward(x, packed, actions)
    jax.block_until_ready((actor, critic))

    assert actor.shape == (B, actions) and critic.shape == (B, 1)

    # Tight check vs a reference applying the same bf16 operand rounding.
    ref_a_bf, ref_c_bf = reference_forward(x, params, matmul_dtype=jnp.bfloat16)
    assert jnp.allclose(actor, ref_a_bf, atol=2e-3, rtol=2e-3)
    assert jnp.allclose(critic, ref_c_bf, atol=2e-3, rtol=2e-3)

    # Loose sanity check vs the full-f32 PyTorch-semantics reference.
    ref_a_f32, ref_c_f32 = reference_forward(x, params, matmul_dtype=jnp.float32)
    assert jnp.allclose(actor, ref_a_f32, atol=3e-2, rtol=3e-2)
    assert jnp.allclose(critic, ref_c_f32, atol=3e-2, rtol=3e-2)

    # log_softmax over dim=0: each actor column should sum to 1 in prob space.
    assert jnp.allclose(jnp.exp(actor).sum(axis=0), jnp.ones((actions,)), atol=1e-3)

    print("KERNEL_OK")
</pallas_src>

<mosaic_0001>
module attributes {stable_mosaic.version = 11 : i64} {
  func.func @actor_critic_kernel(%arg0: memref<8x16xf32, #tpu.memory_space<vmem>>, %arg1: memref<16x64xbf16, #tpu.memory_space<vmem>>, %arg2: memref<1x64xf32, #tpu.memory_space<vmem>>, %arg3: memref<64x128xbf16, #tpu.memory_space<vmem>>, %arg4: memref<1x128xf32, #tpu.memory_space<vmem>>, %arg5: memref<128x128xbf16, #tpu.memory_space<vmem>>, %arg6: memref<1x128xf32, #tpu.memory_space<vmem>>, %arg7: memref<1x128xf32, #tpu.memory_space<vmem>>, %arg8: memref<1x1xf32, #tpu.memory_space<vmem>>, %arg9: memref<8x128xf32, #tpu.memory_space<vmem>>) attributes {dimension_semantics = [], scalar_prefetch = 0 : i64, scratch_operands = 0 : i64, tpu.core_type = #tpu.core_type<tc>} {
    %c0 = arith.constant 0 : index
    %c0_0 = arith.constant 0 : index
    %0 = vector.load %arg0[%c0, %c0_0] : memref<8x16xf32, #tpu.memory_space<vmem>>, vector<8x16xf32>
    %1 = arith.mulf %0, %0 : vector<8x16xf32>
    %cst = arith.constant dense<0.000000e+00> : vector<16xf32>
    %2 = vector.multi_reduction <add>, %1, %cst [0] : vector<8x16xf32> to vector<16xf32>
    %3 = vector.shape_cast %2 : vector<16xf32> to vector<1x16xf32>
    %cst_1 = arith.constant 1.000000e-24 : f32
    %4 = vector.broadcast %cst_1 : f32 to vector<1x16xf32>
    %5 = arith.maximumf %3, %4 : vector<1x16xf32>
    %6 = math.rsqrt %5 : vector<1x16xf32>
    %7 = vector.broadcast %6 : vector<1x16xf32> to vector<8x16xf32>
    %8 = arith.mulf %0, %7 : vector<8x16xf32>
    %9 = arith.truncf %8 : vector<8x16xf32> to vector<8x16xbf16>
    %c0_2 = arith.constant 0 : index
    %c0_3 = arith.constant 0 : index
    %10 = vector.load %arg1[%c0_2, %c0_3] : memref<16x64xbf16, #tpu.memory_space<vmem>>, vector<16x64xbf16>
    %cst_4 = arith.constant dense<0.000000e+00> : vector<8x64xf32>
    %11 = tpu.matmul %9, %10, %cst_4 {dimension_numbers = #tpu.dot_dimension_numbers<[1], [0], [0], [1], [0, 0, 1, 1], [], []>} : vector<8x16xbf16>, vector<16x64xbf16>, vector<8x64xf32> -> vector<8x64xf32>
    %c0_5 = arith.constant 0 : index
    %c0_6 = arith.constant 0 : index
    %12 = vector.load %arg2[%c0_5, %c0_6] : memref<1x64xf32, #tpu.memory_space<vmem>>, vector<1x64xf32>
    %13 = vector.broadcast %12 : vector<1x64xf32> to vector<8x64xf32>
    %14 = arith.addf %11, %13 : vector<8x64xf32>
    %cst_7 = arith.constant 0.000000e+00 : f32
    %15 = vector.broadcast %cst_7 : f32 to vector<8x64xf32>
    %16 = arith.maximumf %14, %15 : vector<8x64xf32>
    %17 = arith.truncf %16 : vector<8x64xf32> to vector<8x64xbf16>
    %c0_8 = arith.constant 0 : index
    %c0_9 = arith.constant 0 : index
    %18 = vector.load %arg3[%c0_8, %c0_9] : memref<64x128xbf16, #tpu.memory_space<vmem>>, vector<64x128xbf16>
    %cst_10 = arith.constant dense<0.000000e+00> : vector<8x128xf32>
    %19 = tpu.matmul %17, %18, %cst_10 {dimension_numbers = #tpu.dot_dimension_numbers<[1], [0], [0], [1], [0, 0, 1, 1], [], []>} : vector<8x64xbf16>, vector<64x128xbf16>, vector<8x128xf32> -> vector<8x128xf32>
    %c0_11 = arith.constant 0 : index
    %c0_12 = arith.constant 0 : index
    %20 = vector.load %arg4[%c0_11, %c0_12] : memref<1x128xf32, #tpu.memory_space<vmem>>, vector<1x128xf32>
    %21 = vector.broadcast %20 : vector<1x128xf32> to vector<8x128xf32>
    %22 = arith.addf %19, %21 : vector<8x128xf32>
    %cst_13 = arith.constant 0.000000e+00 : f32
    %23 = vector.broadcast %cst_13 : f32 to vector<8x128xf32>
    %24 = arith.maximumf %22, %23 : vector<8x128xf32>
    %25 = arith.truncf %24 : vector<8x128xf32> to vector<8x128xbf16>
    %c0_14 = arith.constant 0 : index
    %c0_15 = arith.constant 0 : index
    %26 = vector.load %arg5[%c0_14, %c0_15] : memref<128x128xbf16, #tpu.memory_space<vmem>>, vector<128x128xbf16>
    %cst_16 = arith.constant dense<0.000000e+00> : vector<8x128xf32>
    %27 = tpu.matmul %25, %26, %cst_16 {dimension_numbers = #tpu.dot_dimension_numbers<[1], [0], [0], [1], [0, 0, 1, 1], [], []>} : vector<8x128xbf16>, vector<128x128xbf16>, vector<8x128xf32> -> vector<8x128xf32>
    %c0_17 = arith.constant 0 : index
    %c0_18 = arith.constant 0 : index
    %28 = vector.load %arg6[%c0_17, %c0_18] : memref<1x128xf32, #tpu.memory_space<vmem>>, vector<1x128xf32>
    %29 = vector.broadcast %28 : vector<1x128xf32> to vector<8x128xf32>
    %30 = arith.addf %27, %29 : vector<8x128xf32>
    %cst_19 = arith.constant dense<0xFF800000> : vector<128xf32>
    %31 = vector.multi_reduction <maximumf>, %30, %cst_19 [0] : vector<8x128xf32> to vector<128xf32>
    %32 = vector.shape_cast %31 : vector<128xf32> to vector<1x128xf32>
    %33 = vector.broadcast %32 : vector<1x128xf32> to vector<8x128xf32>
    %34 = arith.subf %30, %33 : vector<8x128xf32>
    %35 = math.exp %34 : vector<8x128xf32>
    %cst_20 = arith.constant dense<0.000000e+00> : vector<128xf32>
    %36 = vector.multi_reduction <add>, %35, %cst_20 [0] : vector<8x128xf32> to vector<128xf32>
    %37 = vector.shape_cast %36 : vector<128xf32> to vector<1x128xf32>
    %38 = math.log %37 : vector<1x128xf32>
    %39 = arith.addf %38, %32 : vector<1x128xf32>
    %40 = vector.broadcast %39 : vector<1x128xf32> to vector<8x128xf32>
    %41 = arith.subf %30, %40 : vector<8x128xf32>
    %cst_21 = arith.constant 0.000000e+00 : f32
    %42 = vector.broadcast %cst_21 : f32 to vector<8x128xf32>
    %43 = arith.maximumf %30, %42 : vector<8x128xf32>
    %c0_22 = arith.constant 0 : index
    %c0_23 = arith.constant 0 : index
    %44 = vector.load %arg7[%c0_22, %c0_23] : memref<1x128xf32, #tpu.memory_space<vmem>>, vector<1x128xf32>
    %45 = vector.broadcast %44 : vector<1x128xf32> to vector<8x128xf32>
    %46 = arith.mulf %43, %45 : vector<8x128xf32>
    %cst_24 = arith.constant dense<0.000000e+00> : vector<8xf32>
    %47 = vector.multi_reduction <add>, %46, %cst_24 [1] : vector<8x128xf32> to vector<8xf32>
    %48 = vector.shape_cast %47 : vector<8xf32> to vector<8x1xf32>
    %c0_25 = arith.constant 0 : index
    %c0_26 = arith.constant 0 : index
    %49 = vector.load %arg8[%c0_25, %c0_26] : memref<1x1xf32, #tpu.memory_space<vmem>>, vector<1x1xf32>
    %50 = vector.broadcast %49 : vector<1x1xf32> to vector<8x1xf32>
    %51 = arith.addf %48, %50 : vector<8x1xf32>
    %52 = math.tanh %51 : vector<8x1xf32>
    %53 = tpu.iota {dimensions = array<i32: 1>} : vector<8x128xi32>
    %c4_i32 = arith.constant 4 : i32
    %54 = vector.broadcast %c4_i32 : i32 to vector<8x128xi32>
    %55 = arith.cmpi slt, %53, %54 : vector<8x128xi32>
    %cst_27 = arith.constant 0.000000e+00 : f32
    %56 = vector.broadcast %cst_27 : f32 to vector<8x128xf32>
    %57 = arith.select %55, %41, %56 : vector<8x128xi1>, vector<8x128xf32>
    %c4_i32_28 = arith.constant 4 : i32
    %58 = vector.broadcast %c4_i32_28 : i32 to vector<8x128xi32>
    %59 = arith.cmpi eq, %53, %58 : vector<8x128xi32>
    %60 = vector.shape_cast %52 : vector<8x1xf32> to vector<8x1xf32>
    %61 = vector.broadcast %60 : vector<8x1xf32> to vector<8x128xf32>
    %62 = arith.select %59, %61, %57 : vector<8x128xi1>, vector<8x128xf32>
    %c0_29 = arith.constant 0 : index
    %c0_30 = arith.constant 0 : index
    %63 = vector.load %arg9[%c0_29, %c0_30] : memref<8x128xf32, #tpu.memory_space<vmem>>, vector<8x128xf32>
    tpu.vector_store %arg9[%c0_29, %c0_30], %62 {strides = array<i32>} : memref<8x128xf32, #tpu.memory_space<vmem>>, vector<8x128xf32>,
    return
  }
}

</mosaic_0001>

<llo_original>
// kernel: tpu_custom_call.1
$region0: #{tpu_custom_call.1}
  #allocation0 [shape = 'u32[]', space=smem, size = 0x4, offset = 0x4, fixed_abs, tag = 'smem constant byte address 0x4 - core index']
  #allocation1 [shape = 'u32[144,128]{1,0:T(1,128)}', space=vmem, size = 0x12000, scoped, tag = 'internal scratch']
  #allocation2 [shape = 'f32[1,1]{1,0:T(1,128)S(1)}', space=vmem, size = 0x200, scoped, tag = 'scoped memory for tpu_custom_call.1']
  %s0 = inlined_call_operand.hbm [shape: f32[8,16], index: 0, kind: input, shape index: {}]
  %s1 = inlined_call_operand.hbm [shape: bf16[16,64], index: 1, kind: input, shape index: {}]
  %s2 = inlined_call_operand.vmem [shape: f32[1,64], index: 2, kind: input, shape index: {}]
  %s3 = inlined_call_operand.hbm [shape: bf16[64,128], index: 3, kind: input, shape index: {}]
  %s4 = inlined_call_operand.vmem [shape: f32[1,128], index: 4, kind: input, shape index: {}]
  %s5 = inlined_call_operand.hbm [shape: bf16[128,128], index: 5, kind: input, shape index: {}]
  %s6 = inlined_call_operand.vmem [shape: f32[1,128], index: 6, kind: input, shape index: {}]
  %s7 = inlined_call_operand.vmem [shape: f32[1,128], index: 7, kind: input, shape index: {}]
  %s8 = inlined_call_operand.<no memory space> [shape: f32[1,1], index: 8, kind: input, shape index: {}]
  %s9 = inlined_call_operand.hbm [shape: f32[8,128], index: 9, kind: output, shape index: {}]
  %s10 = sld [smem:[#allocation0]]
  $region62: #{tpu_custom_call.1} parent=0
    _
  %s12 = ssub.s32 1, %s10
  %s13 = scalar_select 0, %s12, %s10
  %v14 = vstv %s8
  %15 = vst [vmem:[#allocation2] sm:$0x1] %v14
  $region1: #{tpu_custom_call.1} parent=0
    #allocation3 [shape = 'u8[4096]{0}', space=vmem, size = 0x1000, scoped, tag = 'input window, operand 0, single buffered']
    #allocation4 [shape = 's32[1]{0}', space=sflag, size = 0x4, scoped, tag = 'scoped memory for tpu_custom_call.1']
    #allocation5 [shape = 's32[1]{0}', space=sflag, size = 0x4, scoped, tag = 'scoped memory for tpu_custom_call.1']
    #allocation6 [shape = 'u8[4096]{0}', space=vmem, size = 0x1000, scoped, tag = 'input window, operand 1, single buffered']
    #allocation7 [shape = 's32[1]{0}', space=sflag, size = 0x4, scoped, tag = 'scoped memory for tpu_custom_call.1']
    #allocation8 [shape = 'u8[16384]{0}', space=vmem, size = 0x4000, scoped, tag = 'input window, operand 3, single buffered']
    #allocation9 [shape = 'u8[32768]{0}', space=vmem, size = 0x8000, scoped, tag = 'input window, operand 5, single buffered']
    #allocation10 [shape = 's32[1]{0}', space=sflag, size = 0x4, scoped, tag = 'scoped memory for tpu_custom_call.1']
    #allocation11 [shape = 'u8[4096]{0}', space=vmem, size = 0x1000, scoped, tag = 'output window, operand 0, single buffered']
    %16 = vsyncpa [#allocation4], 0
    %17 = vsyncpa [#allocation7], 0
    %18 = vsyncpa [#allocation10], 0
    %19 = vsyncpa [#allocation5], 0
    // Predicated region
    $region2: #{tpu_custom_call.1} parent=1 // pred_check
      _
    $region3: #{tpu_custom_call.1} parent=1 // pred_check_branch
      %21 = sbr.rel (0) target = $region5
    $region4: #{tpu_custom_call.1} parent=1 // pred_region
      %s23 = ssub.s32 128, 128
      %24 = vsyncadd [#allocation4], %s23
      %s26 = sshll.u32 [#allocation3], 4
      %s27 = int_to_ptr.vmem [resolvable:$true] %s26
      %29 = dma.hbm_to_vmem [thread:$0]  %s0, 128, %s27, [#allocation4]
    $region5: #{tpu_custom_call.1} parent=1 // pred_fallthru
      _
    // Predicated region
    $region6: #{tpu_custom_call.1} parent=1 // pred_check
      _
    $region7: #{tpu_custom_call.1} parent=1 // pred_check_branch
      %31 = sbr.rel (0) target = $region9
    $region8: #{tpu_custom_call.1} parent=1 // pred_region
      %s33 = ssub.s32 128, 128
      %34 = vsyncadd [#allocation7], %s33
      %s35 = sshll.u32 [#allocation6], 4
      %s36 = int_to_ptr.vmem [resolvable:$true] %s35
      %41 = dma.hbm_to_vmem [thread:$0]  %s1, 128, %s36, [#allocation7], 64, 64, 4
    $region9: #{tpu_custom_call.1} parent=1 // pred_fallthru
      _
    // Predicated region
    $region10: #{tpu_custom_call.1} parent=1 // pred_check
      _
    $region11: #{tpu_custom_call.1} parent=1 // pred_check_branch
      %43 = sbr.rel (0) target = $region13
    $region12: #{tpu_custom_call.1} parent=1 // pred_region
      _
    $region13: #{tpu_custom_call.1} parent=1 // pred_fallthru
      _
    // Predicated region
    $region14: #{tpu_custom_call.1} parent=1 // pred_check
      _
    $region15: #{tpu_custom_call.1} parent=1 // pred_check_branch
      %45 = sbr.rel (0) target = $region17
    $region16: #{tpu_custom_call.1} parent=1 // pred_region
      %s47 = ssub.s32 512, 512
      %48 = vsyncadd [#allocation7], %s47
      %s49 = sshll.u32 [#allocation8], 4
      %s50 = int_to_ptr.vmem [resolvable:$true] %s49
      %55 = dma.hbm_to_vmem [thread:$0]  %s3, 512, %s50, [#allocation7], 64, 64, 4
    $region17: #{tpu_custom_call.1} parent=1 // pred_fallthru
      _
    // Predicated region
    $region18: #{tpu_custom_call.1} parent=1 // pred_check
      _
    $region19: #{tpu_custom_call.1} parent=1 // pred_check_branch
      %57 = sbr.rel (0) target = $region21
    $region20: #{tpu_custom_call.1} parent=1 // pred_region
      _
    $region21: #{tpu_custom_call.1} parent=1 // pred_fallthru
      _
    // Predicated region
    $region22: #{tpu_custom_call.1} parent=1 // pred_check
      _
    $region23: #{tpu_custom_call.1} parent=1 // pred_check_branch
      %59 = sbr.rel (0) target = $region25
    $region24: #{tpu_custom_call.1} parent=1 // pred_region
      %s61 = ssub.s32 1024, 1024
      %62 = vsyncadd [#allocation10], %s61
      %s63 = sshll.u32 [#allocation9], 4
      %s64 = int_to_ptr.vmem [resolvable:$true] %s63
      %69 = dma.hbm_to_vmem [thread:$0]  %s5, 1024, %s64, [#allocation10], 64, 64, 4
    $region25: #{tpu_custom_call.1} parent=1 // pred_fallthru
      _
    // Predicated region
    $region26: #{tpu_custom_call.1} parent=1 // pred_check
      _
    $region27: #{tpu_custom_call.1} parent=1 // pred_check_branch
      %71 = sbr.rel (0) target = $region29
    $region28: #{tpu_custom_call.1} parent=1 // pred_region
      _
    $region29: #{tpu_custom_call.1} parent=1 // pred_fallthru
      _
    // Predicated region
    $region30: #{tpu_custom_call.1} parent=1 // pred_check
      _
    $region31: #{tpu_custom_call.1} parent=1 // pred_check_branch
      %73 = sbr.rel (0) target = $region33
    $region32: #{tpu_custom_call.1} parent=1 // pred_region
      _
    $region33: #{tpu_custom_call.1} parent=1 // pred_fallthru
      _
    // Predicated region
    $region34: #{tpu_custom_call.1} parent=1 // pred_check
      _
    $region35: #{tpu_custom_call.1} parent=1 // pred_check_branch
      %75 = sbr.rel (0) target = $region37
    $region36: #{tpu_custom_call.1} parent=1 // pred_region
      _
    $region37: #{tpu_custom_call.1} parent=1 // pred_fallthru
      _
    // Predicated region
    $region38: #{tpu_custom_call.1} parent=1 // pred_check
      _
    $region39: #{tpu_custom_call.1} parent=1 // pred_check_branch
      %77 = sbr.rel (0) target = $region41
    $region40: #{tpu_custom_call.1} parent=1 // pred_region
      %78 = dma.done [#allocation4], 128
    $region41: #{tpu_custom_call.1} parent=1 // pred_fallthru
      _
    // Predicated region
    $region42: #{tpu_custom_call.1} parent=1 // pred_check
      _
    $region43: #{tpu_custom_call.1} parent=1 // pred_check_branch
      %80 = sbr.rel (0) target = $region45
    $region44: #{tpu_custom_call.1} parent=1 // pred_region
      %81 = dma.done [#allocation7], 128
    $region45: #{tpu_custom_call.1} parent=1 // pred_fallthru
      _
    // Predicated region
    $region46: #{tpu_custom_call.1} parent=1 // pred_check
      _
    $region47: #{tpu_custom_call.1} parent=1 // pred_check_branch
      %83 = sbr.rel (0) target = $region49
    $region48: #{tpu_custom_call.1} parent=1 // pred_region
      %84 = dma.done [#allocation7], 512
    $region49: #{tpu_custom_call.1} parent=1 // pred_fallthru
      _
    // Predicated region
    $region50: #{tpu_custom_call.1} parent=1 // pred_check
      _
    $region51: #{tpu_custom_call.1} parent=1 // pred_check_branch
      %86 = sbr.rel (0) target = $region53
    $region52: #{tpu_custom_call.1} parent=1 // pred_region
      %87 = dma.done [#allocation10], 1024
    $region53: #{tpu_custom_call.1} parent=1 // pred_fallthru
      _
    %v89 = vld [vmem:[#allocation3] sm:$0xff]
    %v90 = vmul.f32 %v89, %v89
    %vm91 = vcmask 130048
    %v92 = vsel %vm91, %v90, 0.0
    %v93 = vrot.slane %v92, 4
    %v94 = vadd.f32 %v92, %v93
    %v95 = vrot.slane %v94, 2
    %v96 = vadd.f32 %v94, %v95
    %v97 = vrot.slane %v96, 1
    %v98 = vadd.f32 %v96, %v97
    %v99 = vmax.f32 %v98, 1e-24
    %v100 = vrsqrt.pop %v99
    %v101 = vmul.f32 %v89, %v100
    %v102 = vpack.c.bf16 %v101, %v101
    %v103 = vld [vmem:[#allocation6] sm:$0xf]
    %v104 = vld [vmem:[#allocation6 + $0x4] sm:$0xf]
    %v105 = vld [vmem:[%s2] sm:$0x1]
    %v107 = vlaneseq
    %v108 = vshrl.u32 %v107, 7
    %v109 = vsub.s32 0, %v108
    %v110 = vrot.slane %v105, %v109
    %v114 = vunpack.c.l.b16 %v103
    %v115 = vunpack.c.l.b16 %v104
    %v116 = vpack.c.b16 %v115, %v114
    %v119 = vsel %vm91, %v102, 0
    %121 = vmatprep.subr.bf16.mxu0 0
    %122 = vmatpush1.bf16.msra.mxu0 %v116
    %123 = vmatprep.subr.bf16.mxu0 0
    %124 = vmatpush1.bf16.msra.mxu0 0
    %125 = vmatprep.subr.bf16.mxu0 0
    %126 = vmatpush1.bf16.msra.mxu0 0
    %127 = vmatprep.subr.bf16.mxu0 0
    %128 = vmatpush1.bf16.msra.mxu0 0
    %129 = vmatprep.subr.bf16.mxu0 0
    %130 = vmatpush1.bf16.msra.mxu0 0
    %131 = vmatprep.subr.bf16.mxu0 0
    %132 = vmatpush1.bf16.msra.mxu0 0
    %133 = vmatprep.subr.bf16.mxu0 0
    %134 = vmatpush1.bf16.msra.mxu0 0
    %135 = vmatprep.subr.bf16.mxu0 0
    %136 = vmatpush1.bf16.msra.mxu0 0
    %137 = vmatprep.subr.bf16.mxu0 0
    %138 = vmatpush1.bf16.msra.mxu0 0
    %139 = vmatprep.subr.bf16.mxu0 0
    %140 = vmatpush1.bf16.msra.mxu0 0
    %141 = vmatprep.subr.bf16.mxu0 0
    %142 = vmatpush1.bf16.msra.mxu0 0
    %143 = vmatprep.subr.bf16.mxu0 0
    %144 = vmatpush1.bf16.msra.mxu0 0
    %145 = vmatprep.subr.bf16.mxu0 0
    %146 = vmatpush1.bf16.msra.mxu0 0
    %147 = vmatprep.subr.bf16.mxu0 0
    %148 = vmatpush1.bf16.msra.mxu0 0
    %149 = vmatprep.subr.bf16.mxu0 0
    %150 = vmatpush1.bf16.msra.mxu0 0
    %151 = vmatprep.subr.bf16.mxu0 0
    %152 = vmatpush1.bf16.msra.mxu0 0
    %153 = vmatprep.mubr.bf16.mxu0 0
    %154 = vmatmul.mubr.bf16.gmra.mrb[0].mxu0 %v119
    %v155 = vpop.f32.mrb[0].mxu0
    %v156 = vadd.f32 %v110, %v155
    %v157 = vpop.f32.mrb[0].mxu0
    %v158 = vpop.f32.mrb[0].mxu0
    %v159 = vpop.f32.mrb[0].mxu0
    %160 = vdwg.mxu0
    %v161 = vmax.f32 %v156, 0.0
    %v162 = vpack.c.bf16 %v161, %v161
    %v163 = vld [vmem:[#allocation8] sm:$0xf]
    %v164 = vld [vmem:[#allocation8 + $0x4] sm:$0xf]
    %v165 = vld [vmem:[#allocation8 + $0x8] sm:$0xf]
    %v166 = vld [vmem:[#allocation8 + $0xc] sm:$0xf]
    %v167 = vld [vmem:[#allocation8 + $0x10] sm:$0xf]
    %v168 = vld [vmem:[#allocation8 + $0x14] sm:$0xf]
    %v169 = vld [vmem:[#allocation8 + $0x18] sm:$0xf]
    %v170 = vld [vmem:[#allocation8 + $0x1c] sm:$0xf]
    %v171 = vld [vmem:[%s4] sm:$0x1]
    %v173 = vlaneseq
    %v174 = vshrl.u32 %v173, 7
    %v175 = vsub.s32 0, %v174
    %v176 = vrot.slane %v171, %v175
    %v186 = vunpack.c.l.b16 %v163
    %v187 = vunpack.c.l.b16 %v164
    %v188 = vunpack.c.l.b16 %v165
    %v189 = vunpack.c.l.b16 %v166
    %v190 = vunpack.c.l.b16 %v167
    %v191 = vunpack.c.l.b16 %v168
    %v192 = vunpack.c.l.b16 %v169
    %v193 = vunpack.c.l.b16 %v170
    %v194 = vpack.c.b16 %v187, %v186
    %v195 = vpack.c.b16 %v189, %v188
    %v196 = vpack.c.b16 %v191, %v190
    %v197 = vpack.c.b16 %v193, %v192
    %vm202 = vcmask 523264
    %v204 = vsel %vm202, %v162, 0
    %206 = vmatprep.subr.bf16.mxu0 0
    %207 = vmatpush1.bf16.msra.mxu0 %v194
    %208 = vmatprep.subr.bf16.mxu0 0
    %209 = vmatpush1.bf16.msra.mxu0 %v195
    %210 = vmatprep.subr.bf16.mxu0 0
    %211 = vmatpush1.bf16.msra.mxu0 %v196
    %212 = vmatprep.subr.bf16.mxu0 0
    %213 = vmatpush1.bf16.msra.mxu0 %v197
    %214 = vmatprep.subr.bf16.mxu0 0
    %215 = vmatpush1.bf16.msra.mxu0 0
    %216 = vmatprep.subr.bf16.mxu0 0
    %217 = vmatpush1.bf16.msra.mxu0 0
    %218 = vmatprep.subr.bf16.mxu0 0
    %219 = vmatpush1.bf16.msra.mxu0 0
    %220 = vmatprep.subr.bf16.mxu0 0
    %221 = vmatpush1.bf16.msra.mxu0 0
    %222 = vmatprep.subr.bf16.mxu0 0
    %223 = vmatpush1.bf16.msra.mxu0 0
    %224 = vmatprep.subr.bf16.mxu0 0
    %225 = vmatpush1.bf16.msra.mxu0 0
    %226 = vmatprep.subr.bf16.mxu0 0
    %227 = vmatpush1.bf16.msra.mxu0 0
    %228 = vmatprep.subr.bf16.mxu0 0
    %229 = vmatpush1.bf16.msra.mxu0 0
    %230 = vmatprep.subr.bf16.mxu0 0
    %231 = vmatpush1.bf16.msra.mxu0 0
    %232 = vmatprep.subr.bf16.mxu0 0
    %233 = vmatpush1.bf16.msra.mxu0 0
    %234 = vmatprep.subr.bf16.mxu0 0
    %235 = vmatpush1.bf16.msra.mxu0 0
    %236 = vmatprep.subr.bf16.mxu0 0
    %237 = vmatpush1.bf16.msra.mxu0 0
    %238 = vmatprep.mubr.bf16.mxu0 0
    %239 = vmatmul.mubr.bf16.gmra.mrb[0].mxu0 %v204
    %v240 = vpop.f32.mrb[0].mxu0
    %v241 = vadd.f32 %v176, %v240
    %v242 = vpop.f32.mrb[0].mxu0
    %v243 = vpop.f32.mrb[0].mxu0
    %v244 = vpop.f32.mrb[0].mxu0
    %245 = vdwg.mxu0
    %v246 = vmax.f32 %v241, 0.0
    %v247 = vpack.c.bf16 %v246, %v246
    %v248 = vld [vmem:[#allocation9] sm:$0xf]
    %v249 = vld [vmem:[#allocation9 + $0x4] sm:$0xf]
    %v250 = vld [vmem:[#allocation9 + $0x8] sm:$0xf]
    %v251 = vld [vmem:[#allocation9 + $0xc] sm:$0xf]
    %v252 = vld [vmem:[#allocation9 + $0x10] sm:$0xf]
    %v253 = vld [vmem:[#allocation9 + $0x14] sm:$0xf]
    %v254 = vld [vmem:[#allocation9 + $0x18] sm:$0xf]
    %v255 = vld [vmem:[#allocation9 + $0x1c] sm:$0xf]
    %v256 = vld [vmem:[#allocation9 + $0x20] sm:$0xf]
    %v257 = vld [vmem:[#allocation9 + $0x24] sm:$0xf]
    %v258 = vld [vmem:[#allocation9 + $0x28] sm:$0xf]
    %v259 = vld [vmem:[#allocation9 + $0x2c] sm:$0xf]
    %v260 = vld [vmem:[#allocation9 + $0x30] sm:$0xf]
    %v261 = vld [vmem:[#allocation9 + $0x34] sm:$0xf]
    %v262 = vld [vmem:[#allocation9 + $0x38] sm:$0xf]
    %v263 = vld [vmem:[#allocation9 + $0x3c] sm:$0xf]
    %v264 = vld [vmem:[%s6] sm:$0x1]
    %v266 = vlaneseq
    %v267 = vshrl.u32 %v266, 7
    %v268 = vsub.s32 0, %v267
    %v269 = vrot.slane %v264, %v268
    %v287 = vunpack.c.l.b16 %v248
    %v288 = vunpack.c.l.b16 %v249
    %v289 = vunpack.c.l.b16 %v250
    %v290 = vunpack.c.l.b16 %v251
    %v291 = vunpack.c.l.b16 %v252
    %v292 = vunpack.c.l.b16 %v253
    %v293 = vunpack.c.l.b16 %v254
    %v294 = vunpack.c.l.b16 %v255
    %v295 = vunpack.c.l.b16 %v256
    %v296 = vunpack.c.l.b16 %v257
    %v297 = vunpack.c.l.b16 %v258
    %v298 = vunpack.c.l.b16 %v259
    %v299 = vunpack.c.l.b16 %v260
    %v300 = vunpack.c.l.b16 %v261
    %v301 = vunpack.c.l.b16 %v262
    %v302 = vunpack.c.l.b16 %v263
    %v303 = vpack.c.b16 %v288, %v287
    %v304 = vpack.c.b16 %v290, %v289
    %v305 = vpack.c.b16 %v292, %v291
    %v306 = vpack.c.b16 %v294, %v293
    %v307 = vpack.c.b16 %v296, %v295
    %v308 = vpack.c.b16 %v298, %v297
    %v309 = vpack.c.b16 %v300, %v299
    %v310 = vpack.c.b16 %v302, %v301
    %319 = vmatprep.subr.bf16.mxu0 0
    %320 = vmatpush1.bf16.msra.mxu0 %v303
    %321 = vmatprep.subr.bf16.mxu0 0
    %322 = vmatpush1.bf16.msra.mxu0 %v304
    %323 = vmatprep.subr.bf16.mxu0 0
    %324 = vmatpush1.bf16.msra.mxu0 %v305
    %325 = vmatprep.subr.bf16.mxu0 0
    %326 = vmatpush1.bf16.msra.mxu0 %v306
    %327 = vmatprep.subr.bf16.mxu0 0
    %328 = vmatpush1.bf16.msra.mxu0 %v307
    %329 = vmatprep.subr.bf16.mxu0 0
    %330 = vmatpush1.bf16.msra.mxu0 %v308
    %331 = vmatprep.subr.bf16.mxu0 0
    %332 = vmatpush1.bf16.msra.mxu0 %v309
    %333 = vmatprep.subr.bf16.mxu0 0
    %334 = vmatpush1.bf16.msra.mxu0 %v310
    %335 = vmatprep.subr.bf16.mxu0 0
    %336 = vmatpush1.bf16.msra.mxu0 0
    %337 = vmatprep.subr.bf16.mxu0 0
    %338 = vmatpush1.bf16.msra.mxu0 0
    %339 = vmatprep.subr.bf16.mxu0 0
    %340 = vmatpush1.bf16.msra.mxu0 0
    %341 = vmatprep.subr.bf16.mxu0 0
    %342 = vmatpush1.bf16.msra.mxu0 0
    %343 = vmatprep.subr.bf16.mxu0 0
    %344 = vmatpush1.bf16.msra.mxu0 0
    %345 = vmatprep.subr.bf16.mxu0 0
    %346 = vmatpush1.bf16.msra.mxu0 0
    %347 = vmatprep.subr.bf16.mxu0 0
    %348 = vmatpush1.bf16.msra.mxu0 0
    %349 = vmatprep.subr.bf16.mxu0 0
    %350 = vmatpush1.bf16.msra.mxu0 0
    %351 = vmatprep.mubr.bf16.mxu0 0
    %352 = vmatmul.mubr.bf16.gmra.mrb[0].mxu0 %v247
    %v353 = vpop.f32.mrb[0].mxu0
    %v354 = vadd.f32 %v269, %v353
    %v355 = vpop.f32.mrb[0].mxu0
    %v356 = vpop.f32.mrb[0].mxu0
    %v357 = vpop.f32.mrb[0].mxu0
    %358 = vdwg.mxu0
    %v359 = vrot.slane %v354, 4
    %v360 = vmax.f32 %v354, %v359
    %v361 = vrot.slane %v360, 2
    %v362 = vmax.f32 %v360, %v361
    %v363 = vrot.slane %v362, 1
    %v364 = vmax.f32 %v362, %v363
    %v365 = vsub.f32 %v354, %v364
    %v366 = vmul.f32 %v365, 1.442695
    %v367 = vpow.pop %v366
    %v368 = vrot.slane %v367, 4
    %v369 = vadd.f32 %v367, %v368
    %v370 = vrot.slane %v369, 2
    %v371 = vadd.f32 %v369, %v370
    %v372 = vrot.slane %v371, 1
    %v373 = vadd.f32 %v371, %v372
    %v374 = vlog2.pop %v373
    %v375 = vmul.f32 %v374, 0.6931472
    %v376 = vadd.f32 %v375, %v364
    %v377 = vsub.f32 %v354, %v376
    %v378 = vmax.f32 %v354, 0.0
    %v379 = vld [vmem:[%s7] sm:$0x1]
    %v381 = vlaneseq
    %v382 = vshrl.u32 %v381, 7
    %v383 = vsub.s32 0, %v382
    %v384 = vrot.slane %v379, %v383
    %v386 = vmul.f32 %v378, %v384
    %387 = vadd.xlane.f32.xlu0 %v386
    %v388 = vpop.xlane.xlu0 %387
    %v389 = vld [vmem:[#allocation2] sm:$0x1]
    %v391 = vlaneseq
    %v392 = vshrl.u32 %v391, 7
    %v393 = vsub.s32 0, %v392
    %v394 = vrot.slane %v389, %v393
    %v396 = vadd.f32 %v388, %v394
    %v397 = vtanh.pop %v396
    %v398 = vlaneseq
    %v399 = vand.u32 %v398, 127
    %vm400 = vcmp.lt.s32.totalorder %v399, 4
    %v401 = vsel %vm400, %v377, 0.0
    %vm402 = vcmp.eq.s32.totalorder %v399, 4
    %404 = vset.pattern.permute.xlu0 0
    %405 = vperm.xlu0 %404, %v397
    %v406 = vpop.permute.xlu0 %405
    %v408 = vsel %vm402, %v406, %v401
    %409 = vst [vmem:[#allocation11] sm:$0xff] %v408
    // Predicated region
    $region54: #{tpu_custom_call.1} parent=1 // pred_check
      _
    $region55: #{tpu_custom_call.1} parent=1 // pred_check_branch
      %411 = sbr.rel (0) target = $region57
    $region56: #{tpu_custom_call.1} parent=1 // pred_region
      %s413 = ssub.s32 128, 128
      %414 = vsyncadd [#allocation5], %s413
      %s416 = sshll.u32 [#allocation11], 4
      %s417 = int_to_ptr.vmem [resolvable:$true] %s416
      %419 = dma.vmem_to_hbm [thread:$0]  %s417, 128, %s9, [#allocation5]
    $region57: #{tpu_custom_call.1} parent=1 // pred_fallthru
      _
    // Predicated region
    $region58: #{tpu_custom_call.1} parent=1 // pred_check
      _
    $region59: #{tpu_custom_call.1} parent=1 // pred_check_branch
      %421 = sbr.rel (0) target = $region61
    $region60: #{tpu_custom_call.1} parent=1 // pred_region
      %422 = dma.done [#allocation5], 128
    $region61: #{tpu_custom_call.1} parent=1 // pred_fallthru
      _
    %423 = vsyncpa [#allocation4], 1
    %424 = vsyncpa [#allocation7], 1
    %425 = vsyncpa [#allocation10], 1
    %426 = vsyncpa [#allocation5], 1

</llo_original>
